<compile_context>
chip_gen: v7x
topology: tpu7x:2x2x1
jax: 0.10.0
libtpu: 0.0.40
codegen_flags: <defaults>
</compile_context>

<pallas_src>
import functools

import jax
import jax.numpy as jnp
from jax.experimental import pallas as pl
from jax.experimental.pallas import tpu as pltpu

PACK = 8  # logical rows packed per lane-dense physical row (one sublane group)


def _round_up(a: int, b: int) -> int:
    return ((a + b - 1) // b) * b


def decoder_kernel(x_ref, w1_ref, b1_ref, w2_ref, b2_ref, o_ref):
    # x arrives in its original (e.g. f32) dtype; cast on the VPU (hidden under DMA).
    x = x_ref[...].astype(w1_ref.dtype)                        # (TM, P*latent)
    h = jnp.dot(x, w1_ref[...],
                preferred_element_type=jnp.float32)            # (TM, P*hidden) f32 acc
    h = jnp.maximum(h + b1_ref[...], 0.0)                      # f32 bias + ReLU (v5e-safe)
    y = jnp.dot(h.astype(w2_ref.dtype), w2_ref[...],
                preferred_element_type=jnp.float32)            # (TM, P*out)    f32 acc
    o_ref[...] = (y + b2_ref[...]).astype(o_ref.dtype)


@functools.partial(jax.jit, static_argnames=("tile_m", "compute_dtype", "out_dtype"))
def decoder_forward(x, w1, b1, w2, b2, *, tile_m=16384,
                    compute_dtype=jnp.bfloat16, out_dtype=None):
    """x: (..., latent). w1: (latent, hidden), b1: (hidden,), w2: (hidden, out), b2: (out,).

    Returns (..., out) in `out_dtype` (defaults to x.dtype).
    """
    orig_shape = x.shape
    latent = orig_shape[-1]
    hidden = w1.shape[1]
    out_dim = w2.shape[1]
    if out_dtype is None:
        out_dtype = x.dtype

    x2 = x.reshape(-1, latent)            # free view for any leading batch dims
    N = x2.shape[0]

    # --- pack PACK logical rows per physical row (free row-major view) -------------
    n_pad = _round_up(N, PACK)
    if n_pad != N:
        # Only for ragged N (% PACK != 0): materializes one small padded copy of x.
        x2 = jnp.pad(x2, ((0, n_pad - N), (0, 0)))
    n_pack = n_pad // PACK
    xp = x2.reshape(n_pack, PACK * latent)        # original dtype; cast happens in-kernel

    # --- block-diagonal weights / tiled biases (tiny, computed once per call) ------
    eye_p = jnp.eye(PACK, dtype=compute_dtype)
    w1_blk = jnp.kron(eye_p, w1.astype(compute_dtype))          # (P*latent, P*hidden)
    w2_blk = jnp.kron(eye_p, w2.astype(compute_dtype))          # (P*hidden, P*out)
    b1_blk = jnp.tile(b1.astype(jnp.float32), PACK)[None, :]    # (1, P*hidden)
    b2_blk = jnp.tile(b2.astype(jnp.float32), PACK)[None, :]    # (1, P*out)

    # --- batch tiling over packed rows ---------------------------------------------
    x_itemsize = jnp.dtype(x.dtype).itemsize
    w_itemsize = jnp.dtype(compute_dtype).itemsize
    o_itemsize = jnp.dtype(out_dtype).itemsize

    # Keep (x tile + out tile), double-buffered, well under the 32 MiB scoped limit
    # (v7x only has 64 MiB physical VMEM per TC).
    row_bytes = PACK * (latent * x_itemsize + out_dim * o_itemsize)
    vmem_budget = 12 * 1024 * 1024
    tile_cap = max(8, (vmem_budget // (2 * row_bytes)) // 8 * 8)

    tile_pack = max(tile_m // PACK, 8)
    tile_pack = min(tile_pack, tile_cap)
    tile_pack = _round_up(min(tile_pack, _round_up(n_pack, 8)), 8)
    if pl.cdiv(n_pack, tile_pack) < 2 and n_pack >= 2 * 8:
        # v7x has 2 TensorCores: keep >= 2 "parallel" grid steps when there is enough
        # work to split.  On single-TC v5e/v6e this costs one extra ~0.35us step only.
        tile_pack = _round_up(pl.cdiv(n_pack, 2), 8)
    grid = (pl.cdiv(n_pack, tile_pack),)

    cost = pl.CostEstimate(
        flops=2 * n_pad * PACK * (latent * hidden + hidden * out_dim),
        transcendentals=0,
        bytes_accessed=(n_pad * latent * x_itemsize                       # x read (f32)
                        + PACK * PACK * (latent * hidden
                                         + hidden * out_dim) * w_itemsize  # block weights
                        + PACK * (hidden + out_dim) * 4                    # biases
                        + n_pad * out_dim * o_itemsize),                   # output write
    )

    out_packed = pl.pallas_call(
        decoder_kernel,
        out_shape=jax.ShapeDtypeStruct((n_pack, PACK * out_dim), out_dtype),
        grid_spec=pltpu.PrefetchScalarGridSpec(
            num_scalar_prefetch=0,
            grid=grid,
            in_specs=[
                pl.BlockSpec((tile_pack, PACK * latent), lambda i: (i, 0)),      # x tile
                pl.BlockSpec((PACK * latent, PACK * hidden), lambda i: (0, 0)),  # W1 blk
                pl.BlockSpec((1, PACK * hidden), lambda i: (0, 0)),              # b1
                pl.BlockSpec((PACK * hidden, PACK * out_dim), lambda i: (0, 0)), # W2 blk
                pl.BlockSpec((1, PACK * out_dim), lambda i: (0, 0)),             # b2
            ],
            out_specs=pl.BlockSpec((tile_pack, PACK * out_dim), lambda i: (i, 0)),
        ),
        compiler_params=pltpu.CompilerParams(
            dimension_semantics=("parallel",),      # batch axis -> megacore sharding
            vmem_limit_bytes=32 * 1024 * 1024,      # > v5e's 16 MiB default, v7x-safe
        ),
        cost_estimate=cost,
    )(xp, w1_blk, b1_blk, w2_blk, b2_blk)

    out = out_packed.reshape(n_pad, out_dim)        # free row-major view back to rows
    if n_pad != N:
        out = out[:N]
    return out.reshape(*orig_shape[:-1], out_dim)


def init_decoder_params(key, latent_dim, output_dim, dtype=jnp.float32):
    # Mirrors utils.init_network_weights: normal(std=0.1) weights, zero biases.
    hidden = latent_dim // 2
    k1, k2 = jax.random.split(key, 2)
    # PyTorch Linear weight is (out, in); we store its transpose (in, out).
    w1 = (0.1 * jax.random.normal(k1, (latent_dim, hidden))).astype(dtype)
    b1 = jnp.zeros((hidden,), dtype)
    w2 = (0.1 * jax.random.normal(k2, (hidden, output_dim))).astype(dtype)
    b2 = jnp.zeros((output_dim,), dtype)
    return w1, b1, w2, b2


if __name__ == "__main__":
    key = jax.random.PRNGKey(0)
    k_x, k_p, k_big, k_3d, k_b1, k_b2 = jax.random.split(key, 6)

    latent_dim, output_dim = 32, 16
    w1, b1, w2, b2 = init_decoder_params(k_p, latent_dim, output_dim)

    def ref_fn(x, b1=b1, b2=b2):
        h = jnp.maximum(jnp.dot(x, w1, precision=jax.lax.Precision.HIGHEST) + b1, 0.0)
        return jnp.dot(h, w2, precision=jax.lax.Precision.HIGHEST) + b2

    # 1) small batch, f32 compute path: tight-tolerance correctness check.
    x = jax.random.normal(k_x, (8, latent_dim), jnp.float32)
    out_f32 = jax.block_until_ready(
        decoder_forward(x, w1, b1, w2, b2, compute_dtype=jnp.float32))
    assert out_f32.shape == (8, output_dim) and out_f32.dtype == jnp.float32
    assert jnp.allclose(out_f32, ref_fn(x), atol=1e-4, rtol=1e-4)

    # 2) default bf16 compute path (halves weight/x compute-dtype traffic): loose tol.
    out_bf16 = jax.block_until_ready(decoder_forward(x, w1, b1, w2, b2))
    assert jnp.allclose(out_bf16, ref_fn(x), atol=5e-2, rtol=5e-2)

    # 3) ragged batch (N % 8 != 0) -> row padding + grid of 2 with a partial last block.
    xb = jax.random.normal(k_big, (2500, latent_dim), jnp.float32)
    outb = jax.block_until_ready(decoder_forward(xb, w1, b1, w2, b2))
    assert outb.shape == (2500, output_dim)
    assert jnp.allclose(outb, ref_fn(xb), atol=5e-2, rtol=5e-2)

    # 4) 3-D leading dims (B, T, latent) exercise the flatten/unflatten path.
    xc = jax.random.normal(k_3d, (4, 64, latent_dim), jnp.float32)
    outc = jax.block_until_ready(
        decoder_forward(xc, w1, b1, w2, b2, compute_dtype=jnp.float32))
    assert outc.shape == (4, 64, output_dim)
    refc = ref_fn(xc.reshape(-1, latent_dim)).reshape(4, 64, output_dim)
    assert jnp.allclose(outc, refc, atol=1e-4, rtol=1e-4)

    # 5) nonzero biases exercise the tiled-bias broadcast inside the kernel.
    b1n = 0.05 * jax.random.normal(k_b1, (latent_dim // 2,), jnp.float32)
    b2n = 0.05 * jax.random.normal(k_b2, (output_dim,), jnp.float32)
    outn = jax.block_until_ready(
        decoder_forward(x, w1, b1n, w2, b2n, compute_dtype=jnp.float32))
    assert jnp.allclose(outn, ref_fn(x, b1n, b2n), atol=1e-4, rtol=1e-4)

    print("KERNEL_OK")
</pallas_src>

<mosaic_0001>
module attributes {stable_mosaic.version = 11 : i64} {
  func.func @decoder_kernel(%arg0: i32, %arg1: memref<8x256xf32, #tpu.memory_space<vmem>>, %arg2: memref<256x128xf32, #tpu.memory_space<vmem>>, %arg3: memref<1x128xf32, #tpu.memory_space<vmem>>, %arg4: memref<128x128xf32, #tpu.memory_space<vmem>>, %arg5: memref<1x128xf32, #tpu.memory_space<vmem>>, %arg6: memref<8x128xf32, #tpu.memory_space<vmem>>) attributes {dimension_semantics = [#tpu.dimension_semantics<parallel>], iteration_bounds = array<i64: 1>, scalar_prefetch = 0 : i64, scratch_operands = 0 : i64, tpu.core_type = #tpu.core_type<tc>, window_params = [{transform_indices = @transform_0, window_bounds = array<i64: 8, 256>}, {pipeline_mode = #tpu.pipeline_mode<synchronous>, transform_indices = @transform_1, window_bounds = array<i64: 256, 128>}, {pipeline_mode = #tpu.pipeline_mode<synchronous>, transform_indices = @transform_2, window_bounds = array<i64: 1, 128>}, {pipeline_mode = #tpu.pipeline_mode<synchronous>, transform_indices = @transform_3, window_bounds = array<i64: 128, 128>}, {pipeline_mode = #tpu.pipeline_mode<synchronous>, transform_indices = @transform_4, window_bounds = array<i64: 1, 128>}, {transform_indices = @transform_5, window_bounds = array<i64: 8, 128>}]} {
    %c0 = arith.constant 0 : index
    %c0_0 = arith.constant 0 : index
    %0 = vector.load %arg1[%c0, %c0_0] : memref<8x256xf32, #tpu.memory_space<vmem>>, vector<8x256xf32>
    %c0_1 = arith.constant 0 : index
    %c0_2 = arith.constant 0 : index
    %1 = vector.load %arg2[%c0_1, %c0_2] : memref<256x128xf32, #tpu.memory_space<vmem>>, vector<256x128xf32>
    %cst = arith.constant dense<0.000000e+00> : vector<8x128xf32>
    %2 = tpu.matmul %0, %1, %cst {dimension_numbers = #tpu.dot_dimension_numbers<[1], [0], [0], [1], [0, 0, 1, 1], [], []>} : vector<8x256xf32>, vector<256x128xf32>, vector<8x128xf32> -> vector<8x128xf32>
    %c0_3 = arith.constant 0 : index
    %c0_4 = arith.constant 0 : index
    %3 = vector.load %arg3[%c0_3, %c0_4] : memref<1x128xf32, #tpu.memory_space<vmem>>, vector<1x128xf32>
    %4 = vector.broadcast %3 : vector<1x128xf32> to vector<8x128xf32>
    %5 = arith.addf %2, %4 : vector<8x128xf32>
    %cst_5 = arith.constant 0.000000e+00 : f32
    %6 = vector.broadcast %cst_5 : f32 to vector<8x128xf32>
    %7 = arith.maximumf %5, %6 : vector<8x128xf32>
    %c0_6 = arith.constant 0 : index
    %c0_7 = arith.constant 0 : index
    %8 = vector.load %arg4[%c0_6, %c0_7] : memref<128x128xf32, #tpu.memory_space<vmem>>, vector<128x128xf32>
    %cst_8 = arith.constant dense<0.000000e+00> : vector<8x128xf32>
    %9 = tpu.matmul %7, %8, %cst_8 {dimension_numbers = #tpu.dot_dimension_numbers<[1], [0], [0], [1], [0, 0, 1, 1], [], []>} : vector<8x128xf32>, vector<128x128xf32>, vector<8x128xf32> -> vector<8x128xf32>
    %c0_9 = arith.constant 0 : index
    %c0_10 = arith.constant 0 : index
    %10 = vector.load %arg5[%c0_9, %c0_10] : memref<1x128xf32, #tpu.memory_space<vmem>>, vector<1x128xf32>
    %11 = vector.broadcast %10 : vector<1x128xf32> to vector<8x128xf32>
    %12 = arith.addf %9, %11 : vector<8x128xf32>
    %c0_11 = arith.constant 0 : index
    %c0_12 = arith.constant 0 : index
    %13 = vector.load %arg6[%c0_11, %c0_12] : memref<8x128xf32, #tpu.memory_space<vmem>>, vector<8x128xf32>
    tpu.vector_store %arg6[%c0_11, %c0_12], %12 {strides = array<i32>} : memref<8x128xf32, #tpu.memory_space<vmem>>, vector<8x128xf32>,
    return
  }
  func.func @transform_0(%arg0: i32) -> (i32, i32) {
    %c0_i32 = arith.constant 0 : i32
    %c0_i32_0 = arith.constant 0 : i32
    return %arg0, %c0_i32 : i32, i32
  }
  func.func @transform_1(%arg0: i32) -> (i32, i32) {
    %c0_i32 = arith.constant 0 : i32
    %c0_i32_0 = arith.constant 0 : i32
    %c0_i32_1 = arith.constant 0 : i32
    return %c0_i32, %c0_i32_0 : i32, i32
  }
  func.func @transform_2(%arg0: i32) -> (i32, i32) {
    %c0_i32 = arith.constant 0 : i32
    %c0_i32_0 = arith.constant 0 : i32
    %c0_i32_1 = arith.constant 0 : i32
    return %c0_i32, %c0_i32_0 : i32, i32
  }
  func.func @transform_3(%arg0: i32) -> (i32, i32) {
    %c0_i32 = arith.constant 0 : i32
    %c0_i32_0 = arith.constant 0 : i32
    %c0_i32_1 = arith.constant 0 : i32
    return %c0_i32, %c0_i32_0 : i32, i32
  }
  func.func @transform_4(%arg0: i32) -> (i32, i32) {
    %c0_i32 = arith.constant 0 : i32
    %c0_i32_0 = arith.constant 0 : i32
    %c0_i32_1 = arith.constant 0 : i32
    return %c0_i32, %c0_i32_0 : i32, i32
  }
  func.func @transform_5(%arg0: i32) -> (i32, i32) {
    %c0_i32 = arith.constant 0 : i32
    %c0_i32_0 = arith.constant 0 : i32
    return %arg0, %c0_i32 : i32, i32
  }
}

</mosaic_0001>

<llo_original>
// kernel: tile.13
$region0: #{tile.13}
  #allocation0 [shape = 's32[1]{0}', space=sflag, size = 0x4, scoped, tag = 'scoped memory for tile.13']
  %s0 = inlined_call_operand.vmem [shape: f32[16], index: 0, kind: input, shape index: {}]
  %s1 = inlined_call_operand.vmem [shape: f32[8,16], index: 1, kind: output, shape index: {}]
  // Predicated region
  $region2: #{tile.13} parent=0 // pred_check
    _
  $region3: #{tile.13} parent=0 // pred_check_branch
    %3 = sbr.rel (0) target = $region5
  $region4: #{tile.13} parent=0 // pred_region
    _
  $region5: #{tile.13} parent=0 // pred_fallthru
    _
  %v4 = vld [vmem:[%s0] ss:$0 sm:$0xff]
  %5 = vst [vmem:[%s1] sm:$0xff] %v4

// kernel: tile.14
$region0: #{tile.14}
  %s0 = inlined_call_operand.vmem [shape: f32[8,16], index: 0, kind: input, shape index: {}]
  %s1 = inlined_call_operand.vmem [shape: f32[1,128], index: 1, kind: output, shape index: {}]
  $region1: #{tile.14} parent=0
    #allocation0 [shape = 'u8[4096]{0}', space=vmem, size = 0x1000, scoped, tag = 'scoped mem for output reshape']
    %v2 = vld [vmem:[%s0] sm:$0x1]
    %vm3 = vcmask 130048
    %4 = vst.msk [vmem:[#allocation0] sm:$0x1] %vm3, %v2
    %s5 = scalar_lea.vmem %s0, 7
    %v6 = vld [vmem:[%s5] sm:$0x1]
    %7 = vrot.lane.b32.xlu0 %v6, 112
    %v8 = vpop.permute.xlu0 %7
    %vm9 = vcmask 1048448
    %10 = vst.msk [vmem:[#allocation0] sm:$0x1] %vm9, %v8
    %s11 = scalar_lea.vmem %s0, 6
    %v12 = vld [vmem:[%s11] sm:$0x1]
    %13 = vrot.lane.b32.xlu0 %v12, 96
    %v14 = vpop.permute.xlu0 %13
    %vm15 = vcmask 917248
    %16 = vst.msk [vmem:[#allocation0] sm:$0x1] %vm15, %v14
    %s17 = scalar_lea.vmem %s0, 5
    %v18 = vld [vmem:[%s17] sm:$0x1]
    %19 = vrot.lane.b32.xlu0 %v18, 80
    %v20 = vpop.permute.xlu0 %19
    %vm21 = vcmask 786048
    %22 = vst.msk [vmem:[#allocation0] sm:$0x1] %vm21, %v20
    %s23 = scalar_lea.vmem %s0, 4
    %v24 = vld [vmem:[%s23] sm:$0x1]
    %25 = vrot.lane.b32.xlu0 %v24, 64
    %v26 = vpop.permute.xlu0 %25
    %vm27 = vcmask 654848
    %28 = vst.msk [vmem:[#allocation0] sm:$0x1] %vm27, %v26
    %s29 = scalar_lea.vmem %s0, 3
    %v30 = vld [vmem:[%s29] sm:$0x1]
    %31 = vrot.lane.b32.xlu0 %v30, 48
    %v32 = vpop.permute.xlu0 %31
    %vm33 = vcmask 523648
    %34 = vst.msk [vmem:[#allocation0] sm:$0x1] %vm33, %v32
    %s35 = scalar_lea.vmem %s0, 2
    %v36 = vld [vmem:[%s35] sm:$0x1]
    %37 = vrot.lane.b32.xlu0 %v36, 32
    %v38 = vpop.permute.xlu0 %37
    %vm39 = vcmask 392448
    %40 = vst.msk [vmem:[#allocation0] sm:$0x1] %vm39, %v38
    %s41 = scalar_lea.vmem %s0, 1
    %v42 = vld [vmem:[%s41] sm:$0x1]
    %43 = vrot.lane.b32.xlu0 %v42, 16
    %v44 = vpop.permute.xlu0 %43
    %vm45 = vcmask 261248
    %46 = vst.msk [vmem:[#allocation0] sm:$0x1] %vm45, %v44
    %s48 = sshllo.u32 0, 1
    %v50 = vld [vmem:[#allocation0] sm:%s48]
    %s51 = sshllo.u32 0, 1
    %52 = vst [vmem:[%s1] sm:%s51] %v50

// kernel: decoder_forward.1
$region0: #{decoder_forward.1}
  #allocation0 [shape = 'u32[]', space=smem, size = 0x4, offset = 0x4, fixed_abs, tag = 'smem constant byte address 0x4 - core index']
  #allocation1 [shape = 'u32[144,128]{1,0:T(1,128)}', space=vmem, size = 0x12000, scoped, tag = 'internal scratch']
  %s0 = inlined_call_operand.vmem [shape: f32[1,256], index: 0, kind: input, shape index: {}]
  %s1 = inlined_call_operand.vmem [shape: f32[256,128], index: 1, kind: input, shape index: {}]
  %s2 = inlined_call_operand.vmem [shape: f32[1,128], index: 2, kind: input, shape index: {}]
  %s3 = inlined_call_operand.vmem [shape: f32[128,128], index: 3, kind: input, shape index: {}]
  %s4 = inlined_call_operand.vmem [shape: f32[1,128], index: 4, kind: input, shape index: {}]
  %s5 = inlined_call_operand.vmem [shape: f32[1,128], index: 5, kind: output, shape index: {}]
  %s6 = sld [smem:[#allocation0]]
  $region60: #{decoder_forward.1} parent=0
    _
  %s8 = ssub.s32 1, %s6
  %s9 = scalar_select 0, %s8, %s6
  $region1: #{decoder_forward.1} parent=0
    #allocation2 [shape = 'u8[4096]{0}', space=vmem, size = 0x1000, scoped, tag = 'output window, operand 0, single buffered']
    // Predicated region
    $region2: #{decoder_forward.1} parent=1 // pred_check
      _
    $region3: #{decoder_forward.1} parent=1 // pred_check_branch
      %11 = sbr.rel (0) target = $region5
    $region4: #{decoder_forward.1} parent=1 // pred_region
      _
    $region5: #{decoder_forward.1} parent=1 // pred_fallthru
      _
    // Predicated region
    $region6: #{decoder_forward.1} parent=1 // pred_check
      _
    $region7: #{decoder_forward.1} parent=1 // pred_check_branch
      %13 = sbr.rel (0) target = $region9
    $region8: #{decoder_forward.1} parent=1 // pred_region
      _
    $region9: #{decoder_forward.1} parent=1 // pred_fallthru
      _
    // Predicated region
    $region10: #{decoder_forward.1} parent=1 // pred_check
      _
    $region11: #{decoder_forward.1} parent=1 // pred_check_branch
      %15 = sbr.rel (0) target = $region13
    $region12: #{decoder_forward.1} parent=1 // pred_region
      _
    $region13: #{decoder_forward.1} parent=1 // pred_fallthru
      _
    // Predicated region
    $region14: #{decoder_forward.1} parent=1 // pred_check
      _
    $region15: #{decoder_forward.1} parent=1 // pred_check_branch
      %17 = sbr.rel (0) target = $region17
    $region16: #{decoder_forward.1} parent=1 // pred_region
      _
    $region17: #{decoder_forward.1} parent=1 // pred_fallthru
      _
    // Predicated region
    $region18: #{decoder_forward.1} parent=1 // pred_check
      _
    $region19: #{decoder_forward.1} parent=1 // pred_check_branch
      %19 = sbr.rel (0) target = $region21
    $region20: #{decoder_forward.1} parent=1 // pred_region
      _
    $region21: #{decoder_forward.1} parent=1 // pred_fallthru
      _
    %v20 = vld [vmem:[%s0] sm:$0x3]
    %v21 = vld [vmem:[%s0 + $0x2] sm:$0x3]
    %v22 = vld [vmem:[%s0 + $0x4] sm:$0x3]
    %v23 = vld [vmem:[%s0 + $0x6] sm:$0x3]
    %v24 = vld [vmem:[%s0 + $0x8] sm:$0x3]
    %v25 = vld [vmem:[%s0 + $0xa] sm:$0x3]
    %v26 = vld [vmem:[%s0 + $0xc] sm:$0x3]
    %v27 = vld [vmem:[%s0 + $0xe] sm:$0x3]
    %v28 = vld [vmem:[%s1] sm:$0xff]
    %v29 = vld [vmem:[%s1 + $0x8] sm:$0xff]
    %v30 = vld [vmem:[%s1 + $0x10] sm:$0xff]
    %v31 = vld [vmem:[%s1 + $0x18] sm:$0xff]
    %v32 = vld [vmem:[%s1 + $0x20] sm:$0xff]
    %v33 = vld [vmem:[%s1 + $0x28] sm:$0xff]
    %v34 = vld [vmem:[%s1 + $0x30] sm:$0xff]
    %v35 = vld [vmem:[%s1 + $0x38] sm:$0xff]
    %v36 = vld [vmem:[%s1 + $0x40] sm:$0xff]
    %v37 = vld [vmem:[%s1 + $0x48] sm:$0xff]
    %v38 = vld [vmem:[%s1 + $0x50] sm:$0xff]
    %v39 = vld [vmem:[%s1 + $0x58] sm:$0xff]
    %v40 = vld [vmem:[%s1 + $0x60] sm:$0xff]
    %v41 = vld [vmem:[%s1 + $0x68] sm:$0xff]
    %v42 = vld [vmem:[%s1 + $0x70] sm:$0xff]
    %v43 = vld [vmem:[%s1 + $0x78] sm:$0xff]
    %v44 = vld [vmem:[%s1 + $0x80] sm:$0xff]
    %v45 = vld [vmem:[%s1 + $0x88] sm:$0xff]
    %v46 = vld [vmem:[%s1 + $0x90] sm:$0xff]
    %v47 = vld [vmem:[%s1 + $0x98] sm:$0xff]
    %v48 = vld [vmem:[%s1 + $0xa0] sm:$0xff]
    %v49 = vld [vmem:[%s1 + $0xa8] sm:$0xff]
    %v50 = vld [vmem:[%s1 + $0xb0] sm:$0xff]
    %v51 = vld [vmem:[%s1 + $0xb8] sm:$0xff]
    %v52 = vld [vmem:[%s1 + $0xc0] sm:$0xff]
    %v53 = vld [vmem:[%s1 + $0xc8] sm:$0xff]
    %v54 = vld [vmem:[%s1 + $0xd0] sm:$0xff]
    %v55 = vld [vmem:[%s1 + $0xd8] sm:$0xff]
    %v56 = vld [vmem:[%s1 + $0xe0] sm:$0xff]
    %v57 = vld [vmem:[%s1 + $0xe8] sm:$0xff]
    %v58 = vld [vmem:[%s1 + $0xf0] sm:$0xff]
    %v59 = vld [vmem:[%s1 + $0xf8] sm:$0xff]
    %v60 = vld [vmem:[%s2] sm:$0x1]
    %v62 = vlaneseq
    %v63 = vshrl.u32 %v62, 7
    %v64 = vsub.s32 0, %v63
    %v65 = vrot.slane %v60, %v64
    %v75 = vcombine.low %v20, %v21
    %v76 = vcombine.low %v22, %v23
    %v77 = vcombine.low %v24, %v25
    %v78 = vcombine.low %v26, %v27
    %v80 = vunpack.c.l.s4 1966171168
    %v81 = vunpack.c.0.s8 %v80
    %v82 = vlaneseq
    %v83 = vshrl.u32 %v82, 7
    %v84 = vsub.s32 %v81, %v83
    %v85 = vrot.slane %v75, %v84
    %v87 = vunpack.c.l.s4 1966171168
    %v88 = vunpack.c.0.s8 %v87
    %v89 = vlaneseq
    %v90 = vshrl.u32 %v89, 7
    %v91 = vsub.s32 %v88, %v90
    %v92 = vrot.slane %v76, %v91
    %v94 = vunpack.c.l.s4 1966171168
    %v95 = vunpack.c.0.s8 %v94
    %v96 = vlaneseq
    %v97 = vshrl.u32 %v96, 7
    %v98 = vsub.s32 %v95, %v97
    %v99 = vrot.slane %v77, %v98
    %v101 = vunpack.c.l.s4 1966171168
    %v102 = vunpack.c.0.s8 %v101
    %v103 = vlaneseq
    %v104 = vshrl.u32 %v103, 7
    %v105 = vsub.s32 %v102, %v104
    %v106 = vrot.slane %v78, %v105
    %v107 = vcombine.low %v85, %v92
    %v108 = vcombine.high %v85, %v92
    %v109 = vcombine.low %v99, %v106
    %v110 = vcombine.high %v99, %v106
    %v112 = vunpack.c.l.s4 1966171168
    %v113 = vunpack.c.0.s8 %v112
    %v114 = vlaneseq
    %v115 = vshrl.u32 %v114, 7
    %v116 = vsub.s32 %v113, %v115
    %v117 = vrot.slane %v107, %v116
    %v119 = vunpack.c.l.s4 1966171168
    %v120 = vunpack.c.0.s8 %v119
    %v121 = vlaneseq
    %v122 = vshrl.u32 %v121, 7
    %v123 = vsub.s32 %v120, %v122
    %v124 = vrot.slane %v108, %v123
    %v126 = vunpack.c.l.s4 1966171168
    %v127 = vunpack.c.0.s8 %v126
    %v128 = vlaneseq
    %v129 = vshrl.u32 %v128, 7
    %v130 = vsub.s32 %v127, %v129
    %v131 = vrot.slane %v109, %v130
    %v133 = vunpack.c.l.s4 1966171168
    %v134 = vunpack.c.0.s8 %v133
    %v135 = vlaneseq
    %v136 = vshrl.u32 %v135, 7
    %v137 = vsub.s32 %v134, %v136
    %v138 = vrot.slane %v110, %v137
    %v139 = vcombine.low %v117, %v131
    %v140 = vcombine.low %v124, %v138
    %143 = vmatprep.subr.mxu0 0.0
    %144 = vmatpush1.msra.mxu0 %v28
    %145 = vmatprep.subr.mxu0 0.0
    %146 = vmatpush1.msra.mxu0 %v29
    %147 = vmatprep.subr.mxu0 0.0
    %148 = vmatpush1.msra.mxu0 %v30
    %149 = vmatprep.subr.mxu0 0.0
    %150 = vmatpush1.msra.mxu0 %v31
    %151 = vmatprep.subr.mxu0 0.0
    %152 = vmatpush1.msra.mxu0 %v32
    %153 = vmatprep.subr.mxu0 0.0
    %154 = vmatpush1.msra.mxu0 %v33
    %155 = vmatprep.subr.mxu0 0.0
    %156 = vmatpush1.msra.mxu0 %v34
    %157 = vmatprep.subr.mxu0 0.0
    %158 = vmatpush1.msra.mxu0 %v35
    %159 = vmatprep.subr.mxu0 0.0
    %160 = vmatpush1.msra.mxu0 %v36
    %161 = vmatprep.subr.mxu0 0.0
    %162 = vmatpush1.msra.mxu0 %v37
    %163 = vmatprep.subr.mxu0 0.0
    %164 = vmatpush1.msra.mxu0 %v38
    %165 = vmatprep.subr.mxu0 0.0
    %166 = vmatpush1.msra.mxu0 %v39
    %167 = vmatprep.subr.mxu0 0.0
    %168 = vmatpush1.msra.mxu0 %v40
    %169 = vmatprep.subr.mxu0 0.0
    %170 = vmatpush1.msra.mxu0 %v41
    %171 = vmatprep.subr.mxu0 0.0
    %172 = vmatpush1.msra.mxu0 %v42
    %173 = vmatprep.subr.mxu0 0.0
    %174 = vmatpush1.msra.mxu0 %v43
    %175 = vmatprep.subr.mxu0 0.0
    %176 = vmatpush1.msra.mxu0 %v44
    %177 = vmatprep.subr.mxu0 0.0
    %178 = vmatpush1.msra.mxu0 %v45
    %179 = vmatprep.subr.mxu0 0.0
    %180 = vmatpush1.msra.mxu0 %v46
    %181 = vmatprep.subr.mxu0 0.0
    %182 = vmatpush1.msra.mxu0 %v47
    %183 = vmatprep.subr.mxu0 0.0
    %184 = vmatpush1.msra.mxu0 %v48
    %185 = vmatprep.subr.mxu0 0.0
    %186 = vmatpush1.msra.mxu0 %v49
    %187 = vmatprep.subr.mxu0 0.0
    %188 = vmatpush1.msra.mxu0 %v50
    %189 = vmatprep.subr.mxu0 0.0
    %190 = vmatpush1.msra.mxu0 %v51
    %191 = vmatprep.subr.mxu0 0.0
    %192 = vmatpush1.msra.mxu0 %v52
    %193 = vmatprep.subr.mxu0 0.0
    %194 = vmatpush1.msra.mxu0 %v53
    %195 = vmatprep.subr.mxu0 0.0
    %196 = vmatpush1.msra.mxu0 %v54
    %197 = vmatprep.subr.mxu0 0.0
    %198 = vmatpush1.msra.mxu0 %v55
    %199 = vmatprep.subr.mxu0 0.0
    %200 = vmatpush1.msra.mxu0 %v56
    %201 = vmatprep.subr.mxu0 0.0
    %202 = vmatpush1.msra.mxu0 %v57
    %203 = vmatprep.subr.mxu0 0.0
    %204 = vmatpush1.msra.mxu0 %v58
    %205 = vmatprep.subr.mxu0 0.0
    %206 = vmatpush1.msra.mxu0 %v59
    %207 = vmatprep.mubr.f32.mxu0 %v140
    %208 = vmatmul.mubr.f32.gmra.mrb[0].mxu0 %v139
    %v209 = vpop.f32.mrb[0].mxu0
    %v210 = vadd.f32 %v65, %v209
    %v211 = vpop.f32.mrb[0].mxu0
    %212 = vdwg.mxu0
    %v213 = vmax.f32 %v210, 0.0
    %v214 = vld [vmem:[%s3] sm:$0xff]
    %v215 = vld [vmem:[%s3 + $0x8] sm:$0xff]
    %v216 = vld [vmem:[%s3 + $0x10] sm:$0xff]
    %v217 = vld [vmem:[%s3 + $0x18] sm:$0xff]
    %v218 = vld [vmem:[%s3 + $0x20] sm:$0xff]
    %v219 = vld [vmem:[%s3 + $0x28] sm:$0xff]
    %v220 = vld [vmem:[%s3 + $0x30] sm:$0xff]
    %v221 = vld [vmem:[%s3 + $0x38] sm:$0xff]
    %v222 = vld [vmem:[%s3 + $0x40] sm:$0xff]
    %v223 = vld [vmem:[%s3 + $0x48] sm:$0xff]
    %v224 = vld [vmem:[%s3 + $0x50] sm:$0xff]
    %v225 = vld [vmem:[%s3 + $0x58] sm:$0xff]
    %v226 = vld [vmem:[%s3 + $0x60] sm:$0xff]
    %v227 = vld [vmem:[%s3 + $0x68] sm:$0xff]
    %v228 = vld [vmem:[%s3 + $0x70] sm:$0xff]
    %v229 = vld [vmem:[%s3 + $0x78] sm:$0xff]
    %v230 = vld [vmem:[%s4] sm:$0x1]
    %v232 = vlaneseq
    %v233 = vshrl.u32 %v232, 7
    %v234 = vsub.s32 0, %v233
    %v235 = vrot.slane %v230, %v234
    %237 = vmatprep.subr.mxu0 0.0
    %238 = vmatpush1.msra.mxu0 %v214
    %239 = vmatprep.subr.mxu0 0.0
    %240 = vmatpush1.msra.mxu0 %v215
    %241 = vmatprep.subr.mxu0 0.0
    %242 = vmatpush1.msra.mxu0 %v216
    %243 = vmatprep.subr.mxu0 0.0
    %244 = vmatpush1.msra.mxu0 %v217
    %245 = vmatprep.subr.mxu0 0.0
    %246 = vmatpush1.msra.mxu0 %v218
    %247 = vmatprep.subr.mxu0 0.0
    %248 = vmatpush1.msra.mxu0 %v219
    %249 = vmatprep.subr.mxu0 0.0
    %250 = vmatpush1.msra.mxu0 %v220
    %251 = vmatprep.subr.mxu0 0.0
    %252 = vmatpush1.msra.mxu0 %v221
    %253 = vmatprep.subr.mxu0 0.0
    %254 = vmatpush1.msra.mxu0 %v222
    %255 = vmatprep.subr.mxu0 0.0
    %256 = vmatpush1.msra.mxu0 %v223
    %257 = vmatprep.subr.mxu0 0.0
    %258 = vmatpush1.msra.mxu0 %v224
    %259 = vmatprep.subr.mxu0 0.0
    %260 = vmatpush1.msra.mxu0 %v225
    %261 = vmatprep.subr.mxu0 0.0
    %262 = vmatpush1.msra.mxu0 %v226
    %263 = vmatprep.subr.mxu0 0.0
    %264 = vmatpush1.msra.mxu0 %v227
    %265 = vmatprep.subr.mxu0 0.0
    %266 = vmatpush1.msra.mxu0 %v228
    %267 = vmatprep.subr.mxu0 0.0
    %268 = vmatpush1.msra.mxu0 %v229
    %269 = vmatprep.subr.mxu0 0.0
    %270 = vmatpush1.msra.mxu0 0.0
    %271 = vmatprep.subr.mxu0 0.0
    %272 = vmatpush1.msra.mxu0 0.0
    %273 = vmatprep.subr.mxu0 0.0
    %274 = vmatpush1.msra.mxu0 0.0
    %275 = vmatprep.subr.mxu0 0.0
    %276 = vmatpush1.msra.mxu0 0.0
    %277 = vmatprep.subr.mxu0 0.0
    %278 = vmatpush1.msra.mxu0 0.0
    %279 = vmatprep.subr.mxu0 0.0
    %280 = vmatpush1.msra.mxu0 0.0
    %281 = vmatprep.subr.mxu0 0.0
    %282 = vmatpush1.msra.mxu0 0.0
    %283 = vmatprep.subr.mxu0 0.0
    %284 = vmatpush1.msra.mxu0 0.0
    %285 = vmatprep.subr.mxu0 0.0
    %286 = vmatpush1.msra.mxu0 0.0
    %287 = vmatprep.subr.mxu0 0.0
    %288 = vmatpush1.msra.mxu0 0.0
    %289 = vmatprep.subr.mxu0 0.0
    %290 = vmatpush1.msra.mxu0 0.0
    %291 = vmatprep.subr.mxu0 0.0
    %292 = vmatpush1.msra.mxu0 0.0
    %293 = vmatprep.subr.mxu0 0.0
    %294 = vmatpush1.msra.mxu0 0.0
    %295 = vmatprep.subr.mxu0 0.0
    %296 = vmatpush1.msra.mxu0 0.0
    %297 = vmatprep.subr.mxu0 0.0
    %298 = vmatpush1.msra.mxu0 0.0
    %299 = vmatprep.subr.mxu0 0.0
    %300 = vmatpush1.msra.mxu0 0.0
    %301 = vmatprep.mubr.f32.mxu0 0.0
    %302 = vmatmul.mubr.f32.gmra.mrb[0].mxu0 %v213
    %v303 = vpop.f32.mrb[0].mxu0
    %v304 = vadd.f32 %v235, %v303
    %v305 = vpop.f32.mrb[0].mxu0
    %306 = vdwg.mxu0
    %307 = vst [vmem:[#allocation2] sm:$0xff] %v304
    // Predicated region
    $region22: #{decoder_forward.1} parent=1 // pred_check
      _
    $region23: #{decoder_forward.1} parent=1 // pred_check_branch
      %309 = sbr.rel (0) target = $region25
    $region24: #{decoder_forward.1} parent=1 // pred_region
      // Predicated region
      $region26: #{decoder_forward.1} parent=24 // pred_check
        _
      $region27: #{decoder_forward.1} parent=24 // pred_check_branch
        %311 = sbr.rel (0) target = $region29
      $region28: #{decoder_forward.1} parent=24 // pred_region
        // Predicated region
        $region30: #{decoder_forward.1} parent=28 // pred_check
          _
        $region31: #{decoder_forward.1} parent=28 // pred_check_branch
          %313 = sbr.rel target = $region33
        $region32: #{decoder_forward.1} parent=28 // pred_region
          // Predicated region
          $region45: #{decoder_forward.1} parent=32 // pred_check
            _
          $region46: #{decoder_forward.1} parent=32 // pred_check_branch
            %328 = sbr.rel (0) target = $region48
          $region47: #{decoder_forward.1} parent=32 // pred_region
            loop: start=0, step=1, limit=1
            $region49: #{decoder_forward.1} parent=47 // loop_pre_header
              _
            $region50: #{decoder_forward.1} parent=47 // loop_header
              %s331 = sphi 0, %s335
              %p332 = scmp.ge.s32.totalorder %s331, 1
              %s336 = sphi [#allocation2], [#allocation2]
              %s337 = sphi %s5, %s5
            $region51: #{decoder_forward.1} parent=47 // loop_header_branch
              %334 = sbr.rel (%p332) target = $region55
            $region52: #{decoder_forward.1} parent=47 // loop_body
              %v338 = vld [vmem:[%s336] sm:$0x1]
              %339 = vst [vmem:[%s337] sm:$0x1] %v338
            $region53: #{decoder_forward.1} parent=47 // loop_footer
              %s335 = sadd.s32 1, %s331
            $region54: #{decoder_forward.1} parent=47 // loop_footer_branch
              %330 = sbr.rel target = $region50
            $region55: #{decoder_forward.1} parent=47 // loop_exit
              _
          $region48: #{decoder_forward.1} parent=32 // pred_fallthru
            _
        $region33: #{decoder_forward.1} parent=28 // pred_fallthru
          _
        // Predicated region
        $region34: #{decoder_forward.1} parent=28 // pred_check
          _
        $region35: #{decoder_forward.1} parent=28 // pred_check_branch
          %315 = sbr.rel (0) target = $region37
        $region36: #{decoder_forward.1} parent=28 // pred_region
          loop: start=0, step=1, limit=1
          $region38: #{decoder_forward.1} parent=36 // loop_pre_header
            _
          $region39: #{decoder_forward.1} parent=36 // loop_header
            %s318 = sphi 0, %s322
            %p319 = scmp.ge.s32.totalorder %s318, 1
            %s323 = sphi [#allocation2], [#allocation2]
            %s324 = sphi %s5, %s5
          $region40: #{decoder_forward.1} parent=36 // loop_header_branch
            %321 = sbr.rel (%p319) target = $region44
          $region41: #{decoder_forward.1} parent=36 // loop_body
            %v325 = vld [vmem:[%s323] sm:$0x1]
            %326 = vst [vmem:[%s324] sm:$0x1] %v325
          $region42: #{decoder_forward.1} parent=36 // loop_footer
            %s322 = sadd.s32 1, %s318
          $region43: #{decoder_forward.1} parent=36 // loop_footer_branch
            %317 = sbr.rel target = $region39
          $region44: #{decoder_forward.1} parent=36 // loop_exit
            _
        $region37: #{decoder_forward.1} parent=28 // pred_fallthru
          _
      $region29: #{decoder_forward.1} parent=24 // pred_fallthru
        _
      %340 = vnop
    $region25: #{decoder_forward.1} parent=1 // pred_fallthru
      _
    // Predicated region
    $region56: #{decoder_forward.1} parent=1 // pred_check
      _
    $region57: #{decoder_forward.1} parent=1 // pred_check_branch
      %342 = sbr.rel (0) target = $region59
    $region58: #{decoder_forward.1} parent=1 // pred_region
      _
    $region59: #{decoder_forward.1} parent=1 // pred_fallthru
      _

</llo_original>
